<compile_context>
chip_gen: v7x
topology: tpu7x:2x2x1
jax: 0.10.0
libtpu: 0.0.40
codegen_flags: <defaults>
</compile_context>

<pallas_src>
import jax
import jax.numpy as jnp
from jax.experimental import pallas as pl
from jax.experimental.pallas import tpu as pltpu

_LANE = 128
_SUBLANE = 8
# Target ~2 MiB per block buffer -> in+out double-buffered stays < 8 MiB VMEM.
_TARGET_BLOCK_BYTES = 2 * 1024 * 1024


def _identity_kernel(x_ref, o_ref):
    # The entire FakeLocEnc forward is the identity.
    o_ref[...] = x_ref[...]


def _as_2d(x: jax.Array) -> jax.Array:
    """View x as a 2-D slab, lane-dense (last dim multiple of 128) if possible."""
    total = x.size
    if total % (_SUBLANE * _LANE) == 0:
        # Lane-dense view -> unmasked full-width vector stores.
        for cols in (1024, 512, 256, _LANE):
            if total % (_SUBLANE * cols) == 0:
                return x.reshape(total // cols, cols)
    if x.ndim >= 2:
        return x.reshape(-1, x.shape[-1])
    return x.reshape(1, -1)


def _pick_row_tile(m: int, n: int, itemsize: int) -> int:
    """Largest multiple-of-8 row tile that divides m and keeps the block ~2 MiB."""
    row_bytes = max(1, n * itemsize)
    max_rows = max(_SUBLANE, _TARGET_BLOCK_BYTES // row_bytes)
    if m <= max_rows:
        return m  # single whole-extent block (always legal regardless of m % 8)
    # Round the cap down to a multiple of the sublane count, then find a divisor.
    start = (min(max_rows, m) // _SUBLANE) * _SUBLANE
    for t in range(start, _SUBLANE - 1, -_SUBLANE):
        if m % t == 0:
            return t
    return m  # fall back to one whole-array block (always legal)


def fake_loc_enc(x: jax.Array, use_pallas: bool = True) -> jax.Array:
    """Pallas equivalent of FakeLocEnc.forward: returns x unchanged."""
    if not use_pallas or x.size == 0:
        # Recommended production path: the identity costs nothing.
        return x

    orig_shape = x.shape
    x2 = _as_2d(x)
    m, n = x2.shape
    tm = _pick_row_tile(m, n, x2.dtype.itemsize)
    grid = (m // tm,)

    y2 = pl.pallas_call(
        _identity_kernel,
        out_shape=jax.ShapeDtypeStruct((m, n), x2.dtype),
        grid=grid,
        in_specs=[pl.BlockSpec((tm, n), lambda i: (i, 0))],
        out_specs=pl.BlockSpec((tm, n), lambda i: (i, 0)),
        # Alias the input HBM buffer to the output: no extra HBM allocation.
        input_output_aliases={0: 0},
        compiler_params=pltpu.CompilerParams(
            dimension_semantics=("parallel",)),
    )(x2)
    return y2.reshape(orig_shape)


if __name__ == "__main__":
    key = jax.random.PRNGKey(0)
    # (batch, 2) lat/lon pairs, consistent with the cali-housing location input.
    x = jax.random.normal(key, (8, 2), dtype=jnp.float32)
    # Keep a separate buffer for comparison: the aliasing call may donate x.
    expected = x + 0.0

    y = fake_loc_enc(x)
    jax.block_until_ready(y)
    assert y.shape == expected.shape and y.dtype == expected.dtype
    assert bool(jnp.array_equal(y, expected))

    # Also exercise the lane-dense, multi-tile, parallel-grid path.
    x_big = jax.random.normal(jax.random.PRNGKey(1), (4096, 256), jnp.float32)
    expected_big = x_big + 0.0
    y_big = fake_loc_enc(x_big)
    jax.block_until_ready(y_big)
    assert bool(jnp.array_equal(y_big, expected_big))

    # And an odd (non lane-aligned) shape to cover the full-extent block path.
    x_odd = jax.random.normal(jax.random.PRNGKey(2), (5, 3, 7), jnp.float32)
    expected_odd = x_odd + 0.0
    y_odd = fake_loc_enc(x_odd)
    jax.block_until_ready(y_odd)
    assert bool(jnp.array_equal(y_odd, expected_odd))

    print("KERNEL_OK")
</pallas_src>

<mosaic_0001>
module attributes {stable_mosaic.version = 11 : i64} {
  func.func @_identity_kernel(%arg0: i32, %arg1: memref<8x2xf32, #tpu.memory_space<vmem>>, %arg2: memref<8x2xf32, #tpu.memory_space<vmem>>) attributes {dimension_semantics = [#tpu.dimension_semantics<parallel>], iteration_bounds = array<i64: 1>, scalar_prefetch = 0 : i64, scratch_operands = 0 : i64, tpu.core_type = #tpu.core_type<tc>, window_params = [{transform_indices = @transform_0, window_bounds = array<i64: 8, 2>}, {transform_indices = @transform_1, window_bounds = array<i64: 8, 2>}]} {
    %c0 = arith.constant 0 : index
    %c0_0 = arith.constant 0 : index
    %0 = vector.load %arg1[%c0, %c0_0] : memref<8x2xf32, #tpu.memory_space<vmem>>, vector<8x2xf32>
    %c0_1 = arith.constant 0 : index
    %c0_2 = arith.constant 0 : index
    %1 = vector.load %arg2[%c0_1, %c0_2] : memref<8x2xf32, #tpu.memory_space<vmem>>, vector<8x2xf32>
    tpu.vector_store %arg2[%c0_1, %c0_2], %0 {strides = array<i32>} : memref<8x2xf32, #tpu.memory_space<vmem>>, vector<8x2xf32>,
    return
  }
  func.func @transform_0(%arg0: i32) -> (i32, i32) {
    %c0_i32 = arith.constant 0 : i32
    %c0_i32_0 = arith.constant 0 : i32
    return %arg0, %c0_i32 : i32, i32
  }
  func.func @transform_1(%arg0: i32) -> (i32, i32) {
    %c0_i32 = arith.constant 0 : i32
    %c0_i32_0 = arith.constant 0 : i32
    return %arg0, %c0_i32 : i32, i32
  }
}

</mosaic_0001>

<llo_original>
// kernel: tpu_custom_call.1
$region0: #{tpu_custom_call.1}
  #allocation0 [shape = 'u32[]', space=smem, size = 0x4, offset = 0x4, fixed_abs, tag = 'smem constant byte address 0x4 - core index']
  #allocation1 [shape = 'u32[144,128]{1,0:T(1,128)}', space=vmem, size = 0x12000, scoped, tag = 'internal scratch']
  %s0 = inlined_call_operand.vmem [shape: f32[8,2], index: 0, kind: input, shape index: {}, may-alias: {0,1}]
  %s1 = inlined_call_operand.vmem [shape: f32[8,2], index: 1, kind: output, shape index: {}, may-alias: {0,1}]
  %s2 = sld [smem:[#allocation0]]
  $region14: #{tpu_custom_call.1} parent=0
    _
  %s4 = ssub.s32 1, %s2
  %s5 = scalar_select 0, %s4, %s2
  // Predicated region
  $region2: #{tpu_custom_call.1} parent=0 // pred_check
    _
  $region3: #{tpu_custom_call.1} parent=0 // pred_check_branch
    %7 = sbr.rel (0) target = $region5
  $region4: #{tpu_custom_call.1} parent=0 // pred_region
    _
  $region5: #{tpu_custom_call.1} parent=0 // pred_fallthru
    _
  %v8 = vld [vmem:[%s0] sm:$0xff]
  %vm9 = vcmask 15360
  %10 = vst.msk [vmem:[%s1] sm:$0xff] %vm9, %v8
  // Predicated region
  $region6: #{tpu_custom_call.1} parent=0 // pred_check
    _
  $region7: #{tpu_custom_call.1} parent=0 // pred_check_branch
    %12 = sbr.rel (0) target = $region9
  $region8: #{tpu_custom_call.1} parent=0 // pred_region
    _
  $region9: #{tpu_custom_call.1} parent=0 // pred_fallthru
    _
  // Predicated region
  $region10: #{tpu_custom_call.1} parent=0 // pred_check
    _
  $region11: #{tpu_custom_call.1} parent=0 // pred_check_branch
    %14 = sbr.rel (0) target = $region13
  $region12: #{tpu_custom_call.1} parent=0 // pred_region
    _
  $region13: #{tpu_custom_call.1} parent=0 // pred_fallthru
    _

</llo_original>
